<compile_context>
chip_gen: v7x
topology: tpu7x:2x2x1
jax: 0.10.0
libtpu: 0.0.40
codegen_flags: <defaults>
</compile_context>

<pallas_src>
import functools

import jax
import jax.numpy as jnp
from jax.experimental import pallas as pl
from jax.experimental.pallas import tpu as pltpu

LANE = 128     # TPU lane width: pad the output feature axis to this.
SUBLANE = 8    # TPU sublane width: pad packed-weight row counts to this.


def _round_up(n: int, m: int) -> int:
    return ((n + m - 1) // m) * m


def mlp_kernel(x_ref, w1_ref, w2_ref, o_ref, *, obs_size, hidden_size):
    # Layer 1: MXU matmul on the natural obs-size contraction dim; bias row
    # (one sublane of the packed weight array) added on the VPU; ReLU.
    h = jnp.maximum(
        jnp.dot(x_ref[...], w1_ref[:obs_size, :],
                preferred_element_type=jnp.float32)
        + w1_ref[obs_size:obs_size + 1, :],
        0.0,
    )
    # Layer 2: same pattern. Output is f32 and lane-dense (A padded to 128).
    o_ref[...] = (
        jnp.dot(h, w2_ref[:hidden_size, :], preferred_element_type=jnp.float32)
        + w2_ref[hidden_size:hidden_size + 1, :]
    )


def prepare_params(w1, b1, w2, b2):
    """One-time parameter packing — call once, outside the per-step RL loop.

    Returns:
      w1b: (round_up(obs+1, 8), H)     rows [0,obs) = w1, row obs = b1, rest 0
      w2b: (round_up(H+1, 8),  A_pad)  rows [0,H)   = w2, row H   = b2, rest 0
    """
    obs, H = w1.shape
    A = w2.shape[1]
    A_pad = _round_up(A, LANE)

    r1 = _round_up(obs + 1, SUBLANE)
    w1b = jnp.zeros((r1, H), dtype=w1.dtype)
    w1b = w1b.at[:obs, :].set(w1)
    w1b = w1b.at[obs, :].set(b1.reshape(-1))

    r2 = _round_up(H + 1, SUBLANE)
    w2b = jnp.zeros((r2, A_pad), dtype=w2.dtype)
    w2b = w2b.at[:H, :A].set(w2)
    w2b = w2b.at[H, :A].set(b2.reshape(-1))
    return w1b, w2b


def net_forward(x, w1b, w2b, obs_size, hidden_size, n_actions):
    """Fused MLP forward. x: (B, obs) f32; w1b/w2b from prepare_params.

    Weights are loop-invariant: in an RL loop, call prepare_params once and
    batch as many observations as possible per call — the fixed dispatch +
    weight DMA cost dominates the ~10K MACs of actual compute at this size.
    """
    B = x.shape[0]
    A_pad = w2b.shape[1]

    kernel = functools.partial(
        mlp_kernel, obs_size=obs_size, hidden_size=hidden_size)

    out_pad = pl.pallas_call(
        kernel,
        out_shape=jax.ShapeDtypeStruct((B, A_pad), x.dtype),
        # Gridless: the whole working set (<64 KB) fits trivially in VMEM on
        # every TPU generation (incl. v7x's 64 MiB); a grid would only add
        # pipeline setup overhead with nothing to pipeline.
        in_specs=[
            pl.BlockSpec(memory_space=pltpu.MemorySpace.VMEM),
            pl.BlockSpec(memory_space=pltpu.MemorySpace.VMEM),
            pl.BlockSpec(memory_space=pltpu.MemorySpace.VMEM),
        ],
        out_specs=pl.BlockSpec(memory_space=pltpu.MemorySpace.VMEM),
    )(x, w1b, w2b)

    # Drop the lane padding added for the full-width store.
    return out_pad[:, :n_actions]


if __name__ == "__main__":
    # FrozenLake-tweaked sizes: obs_size=16 (one-hot states), hidden=32,
    # n_actions=4. Batch = all 16 one-hot states, so a single call produces
    # the full 16x4 Q-table (one dispatch + one weight DMA for every state).
    obs_size, hidden_size, n_actions = 16, 32, 4

    key = jax.random.PRNGKey(0)
    kw1, kb1, kw2, kb2 = jax.random.split(key, 4)

    # Deterministic parameter init (synthetic, not a checkpoint load).
    w1 = jax.random.normal(kw1, (obs_size, hidden_size), dtype=jnp.float32) * 0.1
    b1 = jax.random.normal(kb1, (1, hidden_size), dtype=jnp.float32) * 0.01
    w2 = jax.random.normal(kw2, (hidden_size, n_actions), dtype=jnp.float32) * 0.1
    b2 = jax.random.normal(kb2, (1, n_actions), dtype=jnp.float32) * 0.01

    # All 16 one-hot FrozenLake states in one batch.
    x = jnp.eye(obs_size, dtype=jnp.float32)

    # One-time packing: bias rows folded into sublane-padded weight arrays.
    w1b, w2b = prepare_params(w1, b1, w2, b2)

    out = net_forward(x, w1b, w2b, obs_size, hidden_size, n_actions)
    jax.block_until_ready(out)

    # Reference check in plain JAX (same math as the PyTorch Sequential forward).
    ref = jnp.maximum(x @ w1 + b1, 0.0) @ w2 + b2
    assert out.shape == (obs_size, n_actions)
    assert jnp.allclose(out, ref, atol=1e-5, rtol=1e-5)

    print("KERNEL_OK")
</pallas_src>

<mosaic_0001>
module attributes {stable_mosaic.version = 11 : i64} {
  func.func @mlp_kernel(%arg0: memref<16x16xf32, #tpu.memory_space<vmem>>, %arg1: memref<24x32xf32, #tpu.memory_space<vmem>>, %arg2: memref<40x128xf32, #tpu.memory_space<vmem>>, %arg3: memref<16x128xf32, #tpu.memory_space<vmem>>) attributes {dimension_semantics = [], scalar_prefetch = 0 : i64, scratch_operands = 0 : i64, tpu.core_type = #tpu.core_type<tc>} {
    %c0 = arith.constant 0 : index
    %c0_0 = arith.constant 0 : index
    %0 = vector.load %arg0[%c0, %c0_0] : memref<16x16xf32, #tpu.memory_space<vmem>>, vector<16x16xf32>
    %c0_1 = arith.constant 0 : index
    %c0_2 = arith.constant 0 : index
    %1 = vector.load %arg1[%c0_1, %c0_2] : memref<24x32xf32, #tpu.memory_space<vmem>>, vector<16x32xf32>
    %cst = arith.constant dense<0.000000e+00> : vector<16x32xf32>
    %2 = tpu.matmul %0, %1, %cst {dimension_numbers = #tpu.dot_dimension_numbers<[1], [0], [0], [1], [0, 0, 1, 1], [], []>} : vector<16x16xf32>, vector<16x32xf32>, vector<16x32xf32> -> vector<16x32xf32>
    %c16 = arith.constant 16 : index
    %c0_3 = arith.constant 0 : index
    %3 = vector.load %arg1[%c16, %c0_3] : memref<24x32xf32, #tpu.memory_space<vmem>>, vector<1x32xf32>
    %4 = vector.broadcast %3 : vector<1x32xf32> to vector<16x32xf32>
    %5 = arith.addf %2, %4 : vector<16x32xf32>
    %cst_4 = arith.constant 0.000000e+00 : f32
    %6 = vector.broadcast %cst_4 : f32 to vector<16x32xf32>
    %7 = arith.maximumf %5, %6 : vector<16x32xf32>
    %c0_5 = arith.constant 0 : index
    %c0_6 = arith.constant 0 : index
    %8 = vector.load %arg2[%c0_5, %c0_6] : memref<40x128xf32, #tpu.memory_space<vmem>>, vector<32x128xf32>
    %cst_7 = arith.constant dense<0.000000e+00> : vector<16x128xf32>
    %9 = tpu.matmul %7, %8, %cst_7 {dimension_numbers = #tpu.dot_dimension_numbers<[1], [0], [0], [1], [0, 0, 1, 1], [], []>} : vector<16x32xf32>, vector<32x128xf32>, vector<16x128xf32> -> vector<16x128xf32>
    %c32 = arith.constant 32 : index
    %c0_8 = arith.constant 0 : index
    %10 = vector.load %arg2[%c32, %c0_8] : memref<40x128xf32, #tpu.memory_space<vmem>>, vector<1x128xf32>
    %11 = vector.broadcast %10 : vector<1x128xf32> to vector<16x128xf32>
    %12 = arith.addf %9, %11 : vector<16x128xf32>
    %c0_9 = arith.constant 0 : index
    %c0_10 = arith.constant 0 : index
    %13 = vector.load %arg3[%c0_9, %c0_10] : memref<16x128xf32, #tpu.memory_space<vmem>>, vector<16x128xf32>
    tpu.vector_store %arg3[%c0_9, %c0_10], %12 {strides = array<i32>} : memref<16x128xf32, #tpu.memory_space<vmem>>, vector<16x128xf32>,
    return
  }
}

</mosaic_0001>

<llo_original>
// kernel: tpu_custom_call.1
$region0: #{tpu_custom_call.1}
  #allocation0 [shape = 'u32[]', space=smem, size = 0x4, offset = 0x4, fixed_abs, tag = 'smem constant byte address 0x4 - core index']
  #allocation1 [shape = 'u32[144,128]{1,0:T(1,128)}', space=vmem, size = 0x12000, scoped, tag = 'internal scratch']
  %s0 = inlined_call_operand.hbm [shape: f32[16,16], index: 0, kind: input, shape index: {}]
  %s1 = inlined_call_operand.hbm [shape: f32[24,32], index: 1, kind: input, shape index: {}]
  %s2 = inlined_call_operand.hbm [shape: f32[40,128], index: 2, kind: input, shape index: {}]
  %s3 = inlined_call_operand.hbm [shape: f32[16,128], index: 3, kind: output, shape index: {}]
  %s4 = sld [smem:[#allocation0]]
  $region34: #{tpu_custom_call.1} parent=0
    _
  %s6 = ssub.s32 1, %s4
  %s7 = scalar_select 0, %s6, %s4
  $region1: #{tpu_custom_call.1} parent=0
    #allocation2 [shape = 'u8[8192]{0}', space=vmem, size = 0x2000, scoped, tag = 'input window, operand 0, single buffered']
    #allocation3 [shape = 's32[1]{0}', space=sflag, size = 0x4, scoped, tag = 'scoped memory for tpu_custom_call.1']
    #allocation4 [shape = 's32[1]{0}', space=sflag, size = 0x4, scoped, tag = 'scoped memory for tpu_custom_call.1']
    #allocation5 [shape = 'u8[12288]{0}', space=vmem, size = 0x3000, scoped, tag = 'input window, operand 1, single buffered']
    #allocation6 [shape = 's32[1]{0}', space=sflag, size = 0x4, scoped, tag = 'scoped memory for tpu_custom_call.1']
    #allocation7 [shape = 'u8[20480]{0}', space=vmem, size = 0x5000, scoped, tag = 'input window, operand 2, single buffered']
    #allocation8 [shape = 'u8[8192]{0}', space=vmem, size = 0x2000, scoped, tag = 'output window, operand 0, single buffered']
    %8 = vsyncpa [#allocation3], 0
    %9 = vsyncpa [#allocation6], 0
    %10 = vsyncpa [#allocation4], 0
    // Predicated region
    $region2: #{tpu_custom_call.1} parent=1 // pred_check
      _
    $region3: #{tpu_custom_call.1} parent=1 // pred_check_branch
      %12 = sbr.rel (0) target = $region5
    $region4: #{tpu_custom_call.1} parent=1 // pred_region
      %s14 = ssub.s32 256, 256
      %15 = vsyncadd [#allocation3], %s14
      %s16 = sshll.u32 [#allocation2], 4
      %s17 = int_to_ptr.vmem [resolvable:$true] %s16
      %22 = dma.hbm_to_vmem [thread:$0]  %s0, 256, %s17, [#allocation3], 128, 128, 8
    $region5: #{tpu_custom_call.1} parent=1 // pred_fallthru
      _
    // Predicated region
    $region6: #{tpu_custom_call.1} parent=1 // pred_check
      _
    $region7: #{tpu_custom_call.1} parent=1 // pred_check_branch
      %24 = sbr.rel (0) target = $region9
    $region8: #{tpu_custom_call.1} parent=1 // pred_region
      %s26 = ssub.s32 384, 384
      %27 = vsyncadd [#allocation6], %s26
      %s28 = sshll.u32 [#allocation5], 4
      %s29 = int_to_ptr.vmem [resolvable:$true] %s28
      %34 = dma.hbm_to_vmem [thread:$0]  %s1, 384, %s29, [#allocation6], 128, 128, 8
    $region9: #{tpu_custom_call.1} parent=1 // pred_fallthru
      _
    // Predicated region
    $region10: #{tpu_custom_call.1} parent=1 // pred_check
      _
    $region11: #{tpu_custom_call.1} parent=1 // pred_check_branch
      %36 = sbr.rel (0) target = $region13
    $region12: #{tpu_custom_call.1} parent=1 // pred_region
      %s38 = ssub.s32 640, 640
      %39 = vsyncadd [#allocation6], %s38
      %s40 = sshll.u32 [#allocation7], 4
      %s41 = int_to_ptr.vmem [resolvable:$true] %s40
      %46 = dma.hbm_to_vmem [thread:$0]  %s2, 640, %s41, [#allocation6], 128, 128, 8
    $region13: #{tpu_custom_call.1} parent=1 // pred_fallthru
      _
    // Predicated region
    $region14: #{tpu_custom_call.1} parent=1 // pred_check
      _
    $region15: #{tpu_custom_call.1} parent=1 // pred_check_branch
      %48 = sbr.rel (0) target = $region17
    $region16: #{tpu_custom_call.1} parent=1 // pred_region
      %49 = dma.done [#allocation3], 256
    $region17: #{tpu_custom_call.1} parent=1 // pred_fallthru
      _
    // Predicated region
    $region18: #{tpu_custom_call.1} parent=1 // pred_check
      _
    $region19: #{tpu_custom_call.1} parent=1 // pred_check_branch
      %51 = sbr.rel (0) target = $region21
    $region20: #{tpu_custom_call.1} parent=1 // pred_region
      %52 = dma.done [#allocation6], 384
    $region21: #{tpu_custom_call.1} parent=1 // pred_fallthru
      _
    // Predicated region
    $region22: #{tpu_custom_call.1} parent=1 // pred_check
      _
    $region23: #{tpu_custom_call.1} parent=1 // pred_check_branch
      %54 = sbr.rel (0) target = $region25
    $region24: #{tpu_custom_call.1} parent=1 // pred_region
      %55 = dma.done [#allocation6], 640
    $region25: #{tpu_custom_call.1} parent=1 // pred_fallthru
      _
    %v56 = vld [vmem:[#allocation2] sm:$0xff]
    %v57 = vld [vmem:[#allocation2 + $0x8] sm:$0xff]
    %v58 = vld [vmem:[#allocation5] sm:$0xff]
    %v59 = vld [vmem:[#allocation5 + $0x8] sm:$0xff]
    %v60 = vld [vmem:[#allocation5 + $0x10] sm:$0x1]
    %v61 = vlaneseq
    %v62 = vshrl.u32 %v61, 7
    %v63 = vsub.s32 0, %v62
    %v64 = vrot.slane %v60, %v63
    %vm65 = vcmask 130048
    %v67 = vsel %vm65, %v56, 0
    %v70 = vsel %vm65, %v57, 0
    %72 = vmatprep.subr.mxu0 0.0
    %73 = vmatpush1.msra.mxu0 %v58
    %74 = vmatprep.subr.mxu0 0.0
    %75 = vmatpush1.msra.mxu0 %v59
    %76 = vmatprep.subr.mxu0 0.0
    %77 = vmatpush1.msra.mxu0 0.0
    %78 = vmatprep.subr.mxu0 0.0
    %79 = vmatpush1.msra.mxu0 0.0
    %80 = vmatprep.subr.mxu0 0.0
    %81 = vmatpush1.msra.mxu0 0.0
    %82 = vmatprep.subr.mxu0 0.0
    %83 = vmatpush1.msra.mxu0 0.0
    %84 = vmatprep.subr.mxu0 0.0
    %85 = vmatpush1.msra.mxu0 0.0
    %86 = vmatprep.subr.mxu0 0.0
    %87 = vmatpush1.msra.mxu0 0.0
    %88 = vmatprep.subr.mxu0 0.0
    %89 = vmatpush1.msra.mxu0 0.0
    %90 = vmatprep.subr.mxu0 0.0
    %91 = vmatpush1.msra.mxu0 0.0
    %92 = vmatprep.subr.mxu0 0.0
    %93 = vmatpush1.msra.mxu0 0.0
    %94 = vmatprep.subr.mxu0 0.0
    %95 = vmatpush1.msra.mxu0 0.0
    %96 = vmatprep.subr.mxu0 0.0
    %97 = vmatpush1.msra.mxu0 0.0
    %98 = vmatprep.subr.mxu0 0.0
    %99 = vmatpush1.msra.mxu0 0.0
    %100 = vmatprep.subr.mxu0 0.0
    %101 = vmatpush1.msra.mxu0 0.0
    %102 = vmatprep.subr.mxu0 0.0
    %103 = vmatpush1.msra.mxu0 0.0
    %104 = vmatprep.subr.mxu0 0.0
    %105 = vmatpush1.msra.mxu0 0.0
    %106 = vmatprep.subr.mxu0 0.0
    %107 = vmatpush1.msra.mxu0 0.0
    %108 = vmatprep.subr.mxu0 0.0
    %109 = vmatpush1.msra.mxu0 0.0
    %110 = vmatprep.subr.mxu0 0.0
    %111 = vmatpush1.msra.mxu0 0.0
    %112 = vmatprep.subr.mxu0 0.0
    %113 = vmatpush1.msra.mxu0 0.0
    %114 = vmatprep.subr.mxu0 0.0
    %115 = vmatpush1.msra.mxu0 0.0
    %116 = vmatprep.subr.mxu0 0.0
    %117 = vmatpush1.msra.mxu0 0.0
    %118 = vmatprep.subr.mxu0 0.0
    %119 = vmatpush1.msra.mxu0 0.0
    %120 = vmatprep.subr.mxu0 0.0
    %121 = vmatpush1.msra.mxu0 0.0
    %122 = vmatprep.subr.mxu0 0.0
    %123 = vmatpush1.msra.mxu0 0.0
    %124 = vmatprep.subr.mxu0 0.0
    %125 = vmatpush1.msra.mxu0 0.0
    %126 = vmatprep.subr.mxu0 0.0
    %127 = vmatpush1.msra.mxu0 0.0
    %128 = vmatprep.subr.mxu0 0.0
    %129 = vmatpush1.msra.mxu0 0.0
    %130 = vmatprep.subr.mxu0 0.0
    %131 = vmatpush1.msra.mxu0 0.0
    %132 = vmatprep.subr.mxu0 0.0
    %133 = vmatpush1.msra.mxu0 0.0
    %134 = vmatprep.subr.mxu0 0.0
    %135 = vmatpush1.msra.mxu0 0.0
    %136 = vmatprep.mubr.f32.mxu0 0.0
    %137 = vmatmul.mubr.f32.gmra.mrb[0].mxu0 %v67
    %v138 = vpop.f32.mrb[0].mxu0
    %v139 = vadd.f32 %v64, %v138
    %v140 = vpop.f32.mrb[0].mxu0
    %141 = vmatprep.mubr.f32.mxu0 0.0
    %142 = vmatmul.mubr.f32.gmra.mrb[0].mxu0 %v70
    %v143 = vpop.f32.mrb[0].mxu0
    %v144 = vadd.f32 %v64, %v143
    %v145 = vpop.f32.mrb[0].mxu0
    %146 = vdwg.mxu0
    %v147 = vmax.f32 %v139, 0.0
    %v148 = vmax.f32 %v144, 0.0
    %v149 = vld [vmem:[#allocation7] sm:$0xff]
    %v150 = vld [vmem:[#allocation7 + $0x8] sm:$0xff]
    %v151 = vld [vmem:[#allocation7 + $0x10] sm:$0xff]
    %v152 = vld [vmem:[#allocation7 + $0x18] sm:$0xff]
    %v153 = vld [vmem:[#allocation7 + $0x20] sm:$0x1]
    %v154 = vlaneseq
    %v155 = vshrl.u32 %v154, 7
    %v156 = vsub.s32 0, %v155
    %v157 = vrot.slane %v153, %v156
    %vm158 = vcmask 261120
    %v160 = vsel %vm158, %v147, 0
    %v163 = vsel %vm158, %v148, 0
    %165 = vmatprep.subr.mxu0 0.0
    %166 = vmatpush1.msra.mxu0 %v149
    %167 = vmatprep.subr.mxu0 0.0
    %168 = vmatpush1.msra.mxu0 %v150
    %169 = vmatprep.subr.mxu0 0.0
    %170 = vmatpush1.msra.mxu0 %v151
    %171 = vmatprep.subr.mxu0 0.0
    %172 = vmatpush1.msra.mxu0 %v152
    %173 = vmatprep.subr.mxu0 0.0
    %174 = vmatpush1.msra.mxu0 0.0
    %175 = vmatprep.subr.mxu0 0.0
    %176 = vmatpush1.msra.mxu0 0.0
    %177 = vmatprep.subr.mxu0 0.0
    %178 = vmatpush1.msra.mxu0 0.0
    %179 = vmatprep.subr.mxu0 0.0
    %180 = vmatpush1.msra.mxu0 0.0
    %181 = vmatprep.subr.mxu0 0.0
    %182 = vmatpush1.msra.mxu0 0.0
    %183 = vmatprep.subr.mxu0 0.0
    %184 = vmatpush1.msra.mxu0 0.0
    %185 = vmatprep.subr.mxu0 0.0
    %186 = vmatpush1.msra.mxu0 0.0
    %187 = vmatprep.subr.mxu0 0.0
    %188 = vmatpush1.msra.mxu0 0.0
    %189 = vmatprep.subr.mxu0 0.0
    %190 = vmatpush1.msra.mxu0 0.0
    %191 = vmatprep.subr.mxu0 0.0
    %192 = vmatpush1.msra.mxu0 0.0
    %193 = vmatprep.subr.mxu0 0.0
    %194 = vmatpush1.msra.mxu0 0.0
    %195 = vmatprep.subr.mxu0 0.0
    %196 = vmatpush1.msra.mxu0 0.0
    %197 = vmatprep.subr.mxu0 0.0
    %198 = vmatpush1.msra.mxu0 0.0
    %199 = vmatprep.subr.mxu0 0.0
    %200 = vmatpush1.msra.mxu0 0.0
    %201 = vmatprep.subr.mxu0 0.0
    %202 = vmatpush1.msra.mxu0 0.0
    %203 = vmatprep.subr.mxu0 0.0
    %204 = vmatpush1.msra.mxu0 0.0
    %205 = vmatprep.subr.mxu0 0.0
    %206 = vmatpush1.msra.mxu0 0.0
    %207 = vmatprep.subr.mxu0 0.0
    %208 = vmatpush1.msra.mxu0 0.0
    %209 = vmatprep.subr.mxu0 0.0
    %210 = vmatpush1.msra.mxu0 0.0
    %211 = vmatprep.subr.mxu0 0.0
    %212 = vmatpush1.msra.mxu0 0.0
    %213 = vmatprep.subr.mxu0 0.0
    %214 = vmatpush1.msra.mxu0 0.0
    %215 = vmatprep.subr.mxu0 0.0
    %216 = vmatpush1.msra.mxu0 0.0
    %217 = vmatprep.subr.mxu0 0.0
    %218 = vmatpush1.msra.mxu0 0.0
    %219 = vmatprep.subr.mxu0 0.0
    %220 = vmatpush1.msra.mxu0 0.0
    %221 = vmatprep.subr.mxu0 0.0
    %222 = vmatpush1.msra.mxu0 0.0
    %223 = vmatprep.subr.mxu0 0.0
    %224 = vmatpush1.msra.mxu0 0.0
    %225 = vmatprep.subr.mxu0 0.0
    %226 = vmatpush1.msra.mxu0 0.0
    %227 = vmatprep.subr.mxu0 0.0
    %228 = vmatpush1.msra.mxu0 0.0
    %229 = vmatprep.mubr.f32.mxu0 0.0
    %230 = vmatmul.mubr.f32.gmra.mrb[0].mxu0 %v160
    %v231 = vpop.f32.mrb[0].mxu0
    %v232 = vadd.f32 %v157, %v231
    %v233 = vpop.f32.mrb[0].mxu0
    %234 = vmatprep.mubr.f32.mxu0 0.0
    %235 = vmatmul.mubr.f32.gmra.mrb[0].mxu0 %v163
    %v236 = vpop.f32.mrb[0].mxu0
    %v237 = vadd.f32 %v157, %v236
    %v238 = vpop.f32.mrb[0].mxu0
    %239 = vdwg.mxu0
    %240 = vst [vmem:[#allocation8] sm:$0xff] %v232
    %241 = vst [vmem:[#allocation8 + $0x8] sm:$0xff] %v237
    // Predicated region
    $region26: #{tpu_custom_call.1} parent=1 // pred_check
      _
    $region27: #{tpu_custom_call.1} parent=1 // pred_check_branch
      %243 = sbr.rel (0) target = $region29
    $region28: #{tpu_custom_call.1} parent=1 // pred_region
      %s245 = ssub.s32 256, 256
      %246 = vsyncadd [#allocation4], %s245
      %s247 = sshll.u32 [#allocation8], 4
      %s248 = int_to_ptr.vmem [resolvable:$true] %s247
      %253 = dma.vmem_to_hbm [thread:$0]  %s248, 256, %s3, [#allocation4], 128, 128, 8
    $region29: #{tpu_custom_call.1} parent=1 // pred_fallthru
      _
    // Predicated region
    $region30: #{tpu_custom_call.1} parent=1 // pred_check
      _
    $region31: #{tpu_custom_call.1} parent=1 // pred_check_branch
      %255 = sbr.rel (0) target = $region33
    $region32: #{tpu_custom_call.1} parent=1 // pred_region
      %256 = dma.done [#allocation4], 256
    $region33: #{tpu_custom_call.1} parent=1 // pred_fallthru
      _
    %257 = vsyncpa [#allocation3], 1
    %258 = vsyncpa [#allocation6], 1
    %259 = vsyncpa [#allocation4], 1

</llo_original>
